<compile_context>
chip_gen: v7x
topology: tpu7x:2x2x1
jax: 0.10.0
libtpu: 0.0.40
codegen_flags: <defaults>
</compile_context>

<pallas_src>
import functools

import jax
import jax.numpy as jnp
from jax.experimental import pallas as pl
from jax.experimental.pallas import tpu as pltpu

_LANES = 512  # lane-dense width (multiple of 128)


def _stochastic_depth_kernel(keep_ref, x_ref, o_ref):
    # keep_ref: SMEM int32 scalar (0 or 1), same for every tile.
    keep = keep_ref[0].astype(o_ref.dtype)
    o_ref[...] = x_ref[...] * keep


def _round_up(a, b):
    return ((a + b - 1) // b) * b


def stochastic_depth(x, *, survival_rate, key, training=True):
    """Pallas TPU implementation of StochasticDepth.forward."""
    assert 0.0 <= survival_rate <= 1.0
    if not training:
        return x

    # Single scalar Bernoulli draw: keep == 1 with probability survival_rate
    # (matches torch .bernoulli_(p)). No 1/p rescaling, as in the reference.
    keep = jax.random.bernoulli(key, p=float(survival_rate))
    keep_i32 = jnp.asarray(keep, dtype=jnp.int32).reshape(1)

    orig_shape = x.shape
    total = x.size
    itemsize = jnp.dtype(x.dtype).itemsize
    sublane = {4: 8, 2: 16, 1: 32}.get(itemsize, 8)

    # ~1 MiB per block (per buffer); double-buffered in+out stays well under
    # every chip's scoped VMEM default (16/32/32 MiB on v5e/v6e/v7x).
    max_tile_r = max(sublane, ((1 << 20) // (_LANES * itemsize)) // sublane * sublane)

    rows = pl.cdiv(total, _LANES)
    tile_r = min(max_tile_r, _round_up(rows, sublane))
    rows_padded = _round_up(rows, tile_r)
    padded_total = rows_padded * _LANES

    xf = x.reshape(-1)
    if padded_total != total:
        xf = jnp.pad(xf, (0, padded_total - total))
    x2d = xf.reshape(rows_padded, _LANES)

    grid = (rows_padded // tile_r,)

    out2d = pl.pallas_call(
        _stochastic_depth_kernel,
        out_shape=jax.ShapeDtypeStruct((rows_padded, _LANES), x.dtype),
        grid_spec=pltpu.PrefetchScalarGridSpec(
            num_scalar_prefetch=1,
            grid=grid,
            in_specs=[pl.BlockSpec((tile_r, _LANES), lambda i, keep: (i, 0))],
            out_specs=pl.BlockSpec((tile_r, _LANES), lambda i, keep: (i, 0)),
        ),
        compiler_params=pltpu.CompilerParams(
            dimension_semantics=("parallel",),
            vmem_limit_bytes=32 * 1024 * 1024,
        ),
        cost_estimate=pl.CostEstimate(
            flops=padded_total,
            transcendentals=0,
            bytes_accessed=2 * padded_total * itemsize,
        ),
    )(keep_i32, x2d)

    out_flat = out2d.reshape(-1)
    if padded_total != total:
        out_flat = out_flat[:total]
    return out_flat.reshape(orig_shape)


if __name__ == "__main__":
    import numpy as np

    key = jax.random.PRNGKey(0)
    kx, kdrop = jax.random.split(key)

    # NCHW input, matching the PyTorch module's conv-style tensors.
    x = jax.random.normal(kx, (2, 4, 16, 16), dtype=jnp.float32)
    rate = 0.8  # stochastic_depth_rate (used directly as the Bernoulli prob)

    # Training mode: kernel path.
    y = stochastic_depth(x, survival_rate=rate, key=kdrop, training=True)
    y = jax.block_until_ready(y)

    # Reference: same single Bernoulli draw, broadcast multiply.
    keep_ref = jax.random.bernoulli(kdrop, p=rate)
    y_ref = np.asarray(jnp.where(keep_ref, x, jnp.zeros_like(x)))
    yn, xn = np.asarray(y), np.asarray(x)
    assert np.allclose(yn, y_ref), "kernel output mismatch vs reference"
    assert np.allclose(yn, xn) or np.allclose(yn, 0.0), "unexpected output"

    # Eval mode: passthrough.
    y_eval = jax.block_until_ready(
        stochastic_depth(x, survival_rate=rate, key=kdrop, training=False)
    )
    assert np.allclose(np.asarray(y_eval), xn)

    print("KERNEL_OK")
</pallas_src>

<mosaic_0001>
module attributes {stable_mosaic.version = 11 : i64} {
  func.func @_stochastic_depth_kernel(%arg0: i32, %arg1: memref<1xi32, #tpu.memory_space<smem>>, %arg2: memref<8x512xf32, #tpu.memory_space<vmem>>, %arg3: memref<8x512xf32, #tpu.memory_space<vmem>>) attributes {dimension_semantics = [#tpu.dimension_semantics<parallel>], iteration_bounds = array<i64: 1>, scalar_prefetch = 1 : i64, scratch_operands = 0 : i64, tpu.core_type = #tpu.core_type<tc>, window_params = [{transform_indices = @transform_0, window_bounds = array<i64: 8, 512>}, {transform_indices = @transform_1, window_bounds = array<i64: 8, 512>}]} {
    %c0 = arith.constant 0 : index
    %0 = memref.load %arg1[%c0] : memref<1xi32, #tpu.memory_space<smem>>
    %1 = arith.sitofp %0 : i32 to f32
    %c0_0 = arith.constant 0 : index
    %c0_1 = arith.constant 0 : index
    %2 = vector.load %arg2[%c0_0, %c0_1] : memref<8x512xf32, #tpu.memory_space<vmem>>, vector<8x512xf32>
    %3 = vector.broadcast %1 : f32 to vector<8x512xf32>
    %4 = arith.mulf %2, %3 : vector<8x512xf32>
    %c0_2 = arith.constant 0 : index
    %c0_3 = arith.constant 0 : index
    %5 = vector.load %arg3[%c0_2, %c0_3] : memref<8x512xf32, #tpu.memory_space<vmem>>, vector<8x512xf32>
    tpu.vector_store %arg3[%c0_2, %c0_3], %4 {strides = array<i32>} : memref<8x512xf32, #tpu.memory_space<vmem>>, vector<8x512xf32>,
    return
  }
  func.func @transform_0(%arg0: i32, %arg1: memref<1xi32, #tpu.memory_space<smem>>) -> (i32, i32) {
    %c0_i32 = arith.constant 0 : i32
    %c0_i32_0 = arith.constant 0 : i32
    return %arg0, %c0_i32 : i32, i32
  }
  func.func @transform_1(%arg0: i32, %arg1: memref<1xi32, #tpu.memory_space<smem>>) -> (i32, i32) {
    %c0_i32 = arith.constant 0 : i32
    %c0_i32_0 = arith.constant 0 : i32
    return %arg0, %c0_i32 : i32, i32
  }
}

</mosaic_0001>

<llo_original>
// kernel: tpu_custom_call.1
$region0: #{tpu_custom_call.1}
  #allocation0 [shape = 'u32[]', space=smem, size = 0x4, offset = 0x4, fixed_abs, tag = 'smem constant byte address 0x4 - core index']
  #allocation1 [shape = 'u32[144,128]{1,0:T(1,128)}', space=vmem, size = 0x12000, scoped, tag = 'internal scratch']
  #allocation2 [shape = 's32[1]{0}', space=sflag, size = 0x4, scoped, tag = 'scoped memory for tpu_custom_call.1']
  #allocation3 [shape = 's32[1]{0:T(128)S(6)}', space=smem, size = 0x200, scoped, tag = 'prefetched SMEM operand 0']
  %s0 = inlined_call_operand.<no memory space> [shape: s32[1], index: 0, kind: input, shape index: {}]
  %s1 = inlined_call_operand.hbm [shape: f32[8,512], index: 1, kind: input, shape index: {}]
  %s2 = inlined_call_operand.hbm [shape: f32[8,512], index: 2, kind: output, shape index: {}]
  %s3 = sld [smem:[#allocation0]]
  $region18: #{tpu_custom_call.1} parent=0
    _
  %s5 = ssub.s32 1, %s3
  %s6 = scalar_select 0, %s5, %s3
  %7 = sst [smem:[#allocation3]] %s0
  $region1: #{tpu_custom_call.1} parent=0
    #allocation4 [shape = 'u8[16384]{0}', space=vmem, size = 0x4000, scoped, tag = 'input window, operand 1, single buffered']
    #allocation5 [shape = 's32[1]{0}', space=sflag, size = 0x4, scoped, tag = 'scoped memory for tpu_custom_call.1']
    #allocation6 [shape = 's32[1]{0}', space=sflag, size = 0x4, scoped, tag = 'scoped memory for tpu_custom_call.1']
    #allocation7 [shape = 'u8[16384]{0}', space=vmem, size = 0x4000, scoped, tag = 'output window, operand 0, single buffered']
    %8 = vsyncpa [#allocation5], 0
    %9 = vsyncpa [#allocation6], 0
    // Predicated region
    $region2: #{tpu_custom_call.1} parent=1 // pred_check
      _
    $region3: #{tpu_custom_call.1} parent=1 // pred_check_branch
      %11 = sbr.rel (0) target = $region5
    $region4: #{tpu_custom_call.1} parent=1 // pred_region
      %s13 = ssub.s32 512, 512
      %14 = vsyncadd [#allocation5], %s13
      %s16 = sshll.u32 [#allocation4], 4
      %s17 = int_to_ptr.vmem [resolvable:$true] %s16
      %19 = dma.hbm_to_vmem [thread:$0]  %s1, 512, %s17, [#allocation5]
    $region5: #{tpu_custom_call.1} parent=1 // pred_fallthru
      _
    // Predicated region
    $region6: #{tpu_custom_call.1} parent=1 // pred_check
      _
    $region7: #{tpu_custom_call.1} parent=1 // pred_check_branch
      %21 = sbr.rel (0) target = $region9
    $region8: #{tpu_custom_call.1} parent=1 // pred_region
      %22 = dma.done [#allocation5], 512
    $region9: #{tpu_custom_call.1} parent=1 // pred_fallthru
      _
    %s23 = sld [smem:[#allocation3]]
    %s24 = scvt.s32.f32 %s23
    %v25 = vld [vmem:[#allocation4] sm:$0xff]
    %v26 = vld [vmem:[#allocation4 + $0x8] sm:$0xff]
    %v27 = vld [vmem:[#allocation4 + $0x10] sm:$0xff]
    %v28 = vld [vmem:[#allocation4 + $0x18] sm:$0xff]
    %v29 = vstv %s24
    %v30 = vmul.f32 %v25, %v29
    %v31 = vmul.f32 %v26, %v29
    %v32 = vmul.f32 %v27, %v29
    %v33 = vmul.f32 %v28, %v29
    %34 = vst [vmem:[#allocation7] sm:$0xff] %v30
    %35 = vst [vmem:[#allocation7 + $0x8] sm:$0xff] %v31
    %36 = vst [vmem:[#allocation7 + $0x10] sm:$0xff] %v32
    %37 = vst [vmem:[#allocation7 + $0x18] sm:$0xff] %v33
    // Predicated region
    $region10: #{tpu_custom_call.1} parent=1 // pred_check
      _
    $region11: #{tpu_custom_call.1} parent=1 // pred_check_branch
      %39 = sbr.rel (0) target = $region13
    $region12: #{tpu_custom_call.1} parent=1 // pred_region
      %s41 = ssub.s32 512, 512
      %42 = vsyncadd [#allocation6], %s41
      %s44 = sshll.u32 [#allocation7], 4
      %s45 = int_to_ptr.vmem [resolvable:$true] %s44
      %47 = dma.vmem_to_hbm [thread:$0]  %s45, 512, %s2, [#allocation6]
    $region13: #{tpu_custom_call.1} parent=1 // pred_fallthru
      _
    // Predicated region
    $region14: #{tpu_custom_call.1} parent=1 // pred_check
      _
    $region15: #{tpu_custom_call.1} parent=1 // pred_check_branch
      %49 = sbr.rel (0) target = $region17
    $region16: #{tpu_custom_call.1} parent=1 // pred_region
      %50 = dma.done [#allocation6], 512
    $region17: #{tpu_custom_call.1} parent=1 // pred_fallthru
      _
    %51 = vsyncpa [#allocation5], 1
    %52 = vsyncpa [#allocation6], 1

</llo_original>
